<compile_context>
chip_gen: v5e
topology: v5e:2x2
jax: 0.10.0
libtpu: 0.0.40
codegen_flags: <defaults>
</compile_context>

<pallas_src>
import functools
import math

import jax
import jax.numpy as jnp
from jax.experimental import pallas as pl
from jax.experimental.pallas import tpu as pltpu


def _round_up(x, m):
    return ((x + m - 1) // m) * m


# ----------------------------------------------------------------------------
# Kernel 1: residual add + LayerNorm (prenorm; also emits the new residual)
# ----------------------------------------------------------------------------
def _add_ln_kernel(*refs, eps, has_residual):
    if has_residual:
        x_ref, res_ref, w_ref, b_ref, hid_ref, resid_ref = refs
    else:
        x_ref, w_ref, b_ref, hid_ref, resid_ref = refs
    x = x_ref[...].astype(jnp.float32)
    if has_residual:
        r = x + res_ref[...].astype(jnp.float32)
    else:
        r = x
    mean = jnp.mean(r, axis=-1, keepdims=True)
    c = r - mean
    var = jnp.mean(c * c, axis=-1, keepdims=True)
    n = c * jax.lax.rsqrt(var + eps)
    hid_ref[...] = (n * w_ref[...].astype(jnp.float32)
                    + b_ref[...].astype(jnp.float32)).astype(hid_ref.dtype)
    resid_ref[...] = r.astype(resid_ref.dtype)


def add_layernorm(x, residual, weight, bias, *, eps=1e-5,
                  residual_in_fp32=True, row_tile=256):
    B, S, H = x.shape
    R = B * S
    has_res = residual is not None
    rows = R if R <= row_tile else row_tile
    Rp = _round_up(R, rows)

    ops = [x.reshape(R, H)]
    if has_res:
        ops.append(residual.reshape(R, H))
    if Rp != R:
        # Zero padding is LN-safe (var=0 -> rsqrt(eps)); padded rows are sliced off.
        ops = [jnp.pad(o, ((0, Rp - R), (0, 0))) for o in ops]

    resid_dtype = jnp.float32 if residual_in_fp32 else x.dtype
    row_spec = pl.BlockSpec((rows, H), lambda i: (i, 0))
    vec_spec = pl.BlockSpec((1, H), lambda i: (0, 0))
    in_specs = [row_spec] * len(ops) + [vec_spec, vec_spec]

    hid, resid = pl.pallas_call(
        functools.partial(_add_ln_kernel, eps=eps, has_residual=has_res),
        grid=(Rp // rows,),
        in_specs=in_specs,
        out_specs=[row_spec, row_spec],
        out_shape=[jax.ShapeDtypeStruct((Rp, H), x.dtype),
                   jax.ShapeDtypeStruct((Rp, H), resid_dtype)],
        compiler_params=pltpu.CompilerParams(dimension_semantics=("parallel",)),
    )(*ops, weight.reshape(1, H), bias.reshape(1, H))

    if Rp != R:
        hid, resid = hid[:R], resid[:R]
    return hid.reshape(B, S, H), resid.reshape(B, S, H)


# ----------------------------------------------------------------------------
# Kernel 2: tiled dense linear (x @ W + b) on the MXU
# ----------------------------------------------------------------------------
def _linear_kernel(x_ref, w_ref, b_ref, o_ref, acc_ref):
    @pl.when(pl.program_id(2) == 0)
    def _():
        acc_ref[...] = jnp.zeros(acc_ref.shape, acc_ref.dtype)

    # Native-dtype operands straight into the MXU; accumulate in f32.
    acc_ref[...] += jnp.dot(x_ref[...], w_ref[...],
                            preferred_element_type=jnp.float32)

    @pl.when(pl.program_id(2) == pl.num_programs(2) - 1)
    def _():
        o_ref[...] = (acc_ref[...]
                      + b_ref[...].astype(jnp.float32)).astype(o_ref.dtype)


def linear(x2d, w, b, *, tm=256, tn=256, tk=512):
    M, K = x2d.shape
    Kw, N = w.shape
    assert K == Kw
    # Full-dim blocks for small dims (no padding needed); aligned tiles otherwise.
    tm = M if M <= tm else tm
    tn = N if N <= tn else tn
    tk = K if K <= tk else tk
    Mp, Kp, Np = _round_up(M, tm), _round_up(K, tk), _round_up(N, tn)

    xp = x2d if (Mp, Kp) == (M, K) else jnp.pad(x2d, ((0, Mp - M), (0, Kp - K)))
    wp = w if (Kp, Np) == (K, N) else jnp.pad(w, ((0, Kp - K), (0, Np - N)))
    bp = b if Np == N else jnp.pad(b, ((0, Np - N),))

    out = pl.pallas_call(
        _linear_kernel,
        grid=(Mp // tm, Np // tn, Kp // tk),
        in_specs=[pl.BlockSpec((tm, tk), lambda i, j, k: (i, k)),
                  pl.BlockSpec((tk, tn), lambda i, j, k: (k, j)),
                  pl.BlockSpec((1, tn), lambda i, j, k: (0, j))],
        out_specs=pl.BlockSpec((tm, tn), lambda i, j, k: (i, j)),
        out_shape=jax.ShapeDtypeStruct((Mp, Np), x2d.dtype),
        scratch_shapes=[pltpu.VMEM((tm, tn), jnp.float32)],
        compiler_params=pltpu.CompilerParams(
            dimension_semantics=("parallel", "parallel", "arbitrary")),
    )(xp, wp, bp.reshape(1, Np))

    if (Mp, Np) != (M, N):
        out = out[:M, :N]
    return out


# ----------------------------------------------------------------------------
# Kernel 3: flash-style causal multi-head attention with in-kernel RoPE.
#   All heads are packed along the lane axis ([*, H] blocks, lane-dense output);
#   per-head dots run inside the kernel. KV blocks fully above the causal
#   diagonal are skipped.
# ----------------------------------------------------------------------------
def _rope(t, cos, sin):
    # rotate_half(t) = concat(-t[:, d/2:], t[:, :d/2]); VPU/XLU only — no MXU.
    half = t.shape[-1] // 2
    rot = jnp.concatenate([-t[:, half:], t[:, :half]], axis=-1)
    return t * cos + rot * sin


def _flash_mha_kernel(q_ref, k_ref, v_ref, cosq_ref, sinq_ref, cosk_ref,
                      sink_ref, o_ref, m_sc, l_sc, acc_sc, qrot_sc,
                      *, num_heads, head_dim, tq, tk, scale):
    qi = pl.program_id(1)
    ki = pl.program_id(2)
    d = head_dim

    @pl.when(ki == 0)
    def _init():
        m_sc[...] = jnp.full(m_sc.shape, -jnp.inf, dtype=m_sc.dtype)
        l_sc[...] = jnp.zeros(l_sc.shape, l_sc.dtype)
        acc_sc[...] = jnp.zeros(acc_sc.shape, acc_sc.dtype)
        cos_q = cosq_ref[...]
        sin_q = sinq_ref[...]
        for h in range(num_heads):  # RoPE(Q) computed once per Q block
            q_h = q_ref[0, :, h * d:(h + 1) * d].astype(jnp.float32)
            qrot_sc[h] = _rope(q_h, cos_q, sin_q).astype(qrot_sc.dtype)

    # Skip KV blocks that lie entirely above the causal diagonal.
    @pl.when(ki * tk < (qi + 1) * tq)
    def _body():
        cos_k = cosk_ref[...]
        sin_k = sink_ref[...]
        row = qi * tq + jax.lax.broadcasted_iota(jnp.int32, (tq, tk), 0)
        col = ki * tk + jax.lax.broadcasted_iota(jnp.int32, (tq, tk), 1)
        mask = col <= row
        for h in range(num_heads):
            k_h = k_ref[0, :, h * d:(h + 1) * d].astype(jnp.float32)
            v_h = v_ref[0, :, h * d:(h + 1) * d]
            k_rot = _rope(k_h, cos_k, sin_k).astype(v_h.dtype)
            s = jnp.einsum('qd,kd->qk', qrot_sc[h], k_rot,
                           preferred_element_type=jnp.float32) * scale
            s = jnp.where(mask, s, -1e30)
            m_prev = m_sc[h]
            m_new = jnp.maximum(m_prev, jnp.max(s, axis=-1, keepdims=True))
            alpha = jnp.exp(m_prev - m_new)
            p = jnp.exp(s - m_new)
            l_sc[h] = alpha * l_sc[h] + jnp.sum(p, axis=-1, keepdims=True)
            acc_sc[h] = alpha * acc_sc[h] + jnp.dot(
                p.astype(v_h.dtype), v_h, preferred_element_type=jnp.float32)
            m_sc[h] = m_new

    @pl.when(ki == pl.num_programs(2) - 1)
    def _finalize():
        for h in range(num_heads):
            inv_l = pl.reciprocal(l_sc[h], approx=True)
            o_ref[0, :, h * d:(h + 1) * d] = (acc_sc[h] * inv_l
                                              ).astype(o_ref.dtype)


def attention_mixer(hidden, params, *, num_heads, head_dim):
    B, S, H = hidden.shape
    assert H == num_heads * head_dim
    dtype = hidden.dtype

    # Fused QKV projection (tiled Pallas matmul): [B*S, 3H].
    qkv = linear(hidden.reshape(B * S, H), params["wqkv"], params["bqkv"])
    qkv = qkv.reshape(B, S, 3 * H)

    tq = min(128, _round_up(S, 8))
    tk = tq
    Sp = _round_up(S, tq)

    if H % 128 == 0:
        # Slice Q/K/V straight out of the [B, S, 3H] tensor via BlockSpec lane
        # offsets — no XLA splits or transposes.
        src = qkv if Sp == S else jnp.pad(qkv, ((0, 0), (0, Sp - S), (0, 0)))
        q_in = k_in = v_in = src
        q_col, k_col, v_col = 0, 1, 2
    else:
        # H not lane-aligned (tiny demo shapes): one cheap lane-axis split.
        q_in = qkv[:, :, 0:H]
        k_in = qkv[:, :, H:2 * H]
        v_in = qkv[:, :, 2 * H:3 * H]
        if Sp != S:
            pad = ((0, 0), (0, Sp - S), (0, 0))
            q_in, k_in, v_in = (jnp.pad(a, pad) for a in (q_in, k_in, v_in))
        q_col = k_col = v_col = 0

    # Megatron RotaryEmbedding(kv_channels=head_dim, rotary_percent=1.0) tables.
    inv_freq = 1.0 / (10000.0 ** (jnp.arange(0, head_dim, 2,
                                              dtype=jnp.float32) / head_dim))
    freqs = jnp.arange(Sp, dtype=jnp.float32)[:, None] * inv_freq[None, :]
    emb = jnp.concatenate([freqs, freqs], axis=-1)            # [Sp, head_dim]
    cos_t, sin_t = jnp.cos(emb), jnp.sin(emb)

    scale = 1.0 / math.sqrt(head_dim)
    q_spec = pl.BlockSpec((1, tq, H), lambda b, i, j: (b, i, q_col))
    k_spec = pl.BlockSpec((1, tk, H), lambda b, i, j: (b, j, k_col))
    v_spec = pl.BlockSpec((1, tk, H), lambda b, i, j: (b, j, v_col))
    cq_spec = pl.BlockSpec((tq, head_dim), lambda b, i, j: (i, 0))
    ck_spec = pl.BlockSpec((tk, head_dim), lambda b, i, j: (j, 0))
    o_spec = pl.BlockSpec((1, tq, H), lambda b, i, j: (b, i, 0))

    attn = pl.pallas_call(
        functools.partial(_flash_mha_kernel, num_heads=num_heads,
                          head_dim=head_dim, tq=tq, tk=tk, scale=scale),
        grid=(B, Sp // tq, Sp // tk),
        in_specs=[q_spec, k_spec, v_spec, cq_spec, cq_spec, ck_spec, ck_spec],
        out_specs=o_spec,
        out_shape=jax.ShapeDtypeStruct((B, Sp, H), dtype),
        scratch_shapes=[
            pltpu.VMEM((num_heads, tq, 1), jnp.float32),          # running max
            pltpu.VMEM((num_heads, tq, 1), jnp.float32),          # running sum
            pltpu.VMEM((num_heads, tq, head_dim), jnp.float32),   # accumulator
            pltpu.VMEM((num_heads, tq, head_dim), dtype),         # RoPE'd Q
        ],
        compiler_params=pltpu.CompilerParams(
            dimension_semantics=("parallel", "parallel", "arbitrary")),
    )(q_in, k_in, v_in, cos_t, sin_t, cos_t, sin_t)

    if Sp != S:
        attn = attn[:, :S, :]

    # Output projection; attn is already lane-dense [B, S, H] — no transposes.
    out = linear(attn.reshape(B * S, H), params["wo"], params["bo"])
    return out.reshape(B, S, H)


# ----------------------------------------------------------------------------
# MambaBlock.forward (fused_add_norm=False branch)
# ----------------------------------------------------------------------------
def mamba_block_forward(hidden_states, params, *, num_heads, head_dim,
                        residual=None, from_tf=None,
                        residual_in_fp32=True, eps=1e-5):
    if from_tf is not None:
        # TODO(synk): from_tf branch (norm(residual + from_tf)) not exercised here.
        raise NotImplementedError("from_tf path not implemented")
    # TODO(synk): inference_params / allocate_inference_cache (KV cache decode
    # path) not implemented; forward-pass (prefill) semantics only.
    hid, resid = add_layernorm(hidden_states, residual,
                               params["ln_w"], params["ln_b"],
                               eps=eps, residual_in_fp32=residual_in_fp32)
    out = attention_mixer(hid, params, num_heads=num_heads, head_dim=head_dim)
    return out, resid


if __name__ == "__main__":
    # Small config consistent with the module: hidden_size=32, 4 heads,
    # kv_channels (head_dim)=8, batch=2, seq=8.
    B, S, H = 2, 8, 32
    NUM_HEADS, HEAD_DIM = 4, 8

    key = jax.random.PRNGKey(0)
    k_x, k_res, k_qkv, k_bqkv, k_o, k_bo = jax.random.split(key, 6)

    x = jax.random.normal(k_x, (B, S, H), dtype=jnp.float32)
    prev_residual = jax.random.normal(k_res, (B, S, H), dtype=jnp.float32)

    params = {
        # LayerNorm default init (weight=1, bias=0)
        "ln_w": jnp.ones((H,), dtype=jnp.float32),
        "ln_b": jnp.zeros((H,), dtype=jnp.float32),
        # fused QKV and output projections
        "wqkv": 0.02 * jax.random.normal(k_qkv, (H, 3 * H), dtype=jnp.float32),
        "bqkv": 0.02 * jax.random.normal(k_bqkv, (3 * H,), dtype=jnp.float32),
        "wo": 0.02 * jax.random.normal(k_o, (H, H), dtype=jnp.float32),
        "bo": 0.02 * jax.random.normal(k_bo, (H,), dtype=jnp.float32),
    }

    out, residual = mamba_block_forward(
        x, params, num_heads=NUM_HEADS, head_dim=HEAD_DIM,
        residual=prev_residual, residual_in_fp32=True)
    jax.block_until_ready((out, residual))

    assert out.shape == (B, S, H)
    assert residual.shape == (B, S, H) and residual.dtype == jnp.float32
    assert bool(jnp.all(jnp.isfinite(out))) and bool(jnp.all(jnp.isfinite(residual)))
    print("KERNEL_OK")
</pallas_src>

<mosaic_0001>
module attributes {stable_mosaic.version = 11 : i64} {
  func.func @_add_ln_kernel(%arg0: i32, %arg1: memref<16x32xf32, #tpu.memory_space<vmem>>, %arg2: memref<16x32xf32, #tpu.memory_space<vmem>>, %arg3: memref<1x32xf32, #tpu.memory_space<vmem>>, %arg4: memref<1x32xf32, #tpu.memory_space<vmem>>, %arg5: memref<16x32xf32, #tpu.memory_space<vmem>>, %arg6: memref<16x32xf32, #tpu.memory_space<vmem>>) attributes {dimension_semantics = [#tpu.dimension_semantics<parallel>], iteration_bounds = array<i64: 1>, scalar_prefetch = 0 : i64, scratch_operands = 0 : i64, tpu.core_type = #tpu.core_type<tc>, window_params = [{transform_indices = @transform_0, window_bounds = array<i64: 16, 32>}, {transform_indices = @transform_1, window_bounds = array<i64: 16, 32>}, {pipeline_mode = #tpu.pipeline_mode<synchronous>, transform_indices = @transform_2, window_bounds = array<i64: 1, 32>}, {pipeline_mode = #tpu.pipeline_mode<synchronous>, transform_indices = @transform_3, window_bounds = array<i64: 1, 32>}, {transform_indices = @transform_4, window_bounds = array<i64: 16, 32>}, {transform_indices = @transform_5, window_bounds = array<i64: 16, 32>}]} {
    %c0 = arith.constant 0 : index
    %c0_0 = arith.constant 0 : index
    %0 = vector.load %arg1[%c0, %c0_0] : memref<16x32xf32, #tpu.memory_space<vmem>>, vector<16x32xf32>
    %c0_1 = arith.constant 0 : index
    %c0_2 = arith.constant 0 : index
    %1 = vector.load %arg2[%c0_1, %c0_2] : memref<16x32xf32, #tpu.memory_space<vmem>>, vector<16x32xf32>
    %2 = arith.addf %0, %1 : vector<16x32xf32>
    %cst = arith.constant dense<0.000000e+00> : vector<16xf32>
    %3 = vector.multi_reduction <add>, %2, %cst [1] : vector<16x32xf32> to vector<16xf32>
    %4 = vector.shape_cast %3 : vector<16xf32> to vector<16x1xf32>
    %cst_3 = arith.constant 3.200000e+01 : f32
    %5 = vector.broadcast %cst_3 : f32 to vector<16x1xf32>
    %6 = arith.divf %4, %5 : vector<16x1xf32>
    %7 = vector.broadcast %6 : vector<16x1xf32> to vector<16x32xf32>
    %8 = arith.subf %2, %7 : vector<16x32xf32>
    %9 = arith.mulf %8, %8 : vector<16x32xf32>
    %cst_4 = arith.constant dense<0.000000e+00> : vector<16xf32>
    %10 = vector.multi_reduction <add>, %9, %cst_4 [1] : vector<16x32xf32> to vector<16xf32>
    %11 = vector.shape_cast %10 : vector<16xf32> to vector<16x1xf32>
    %cst_5 = arith.constant 3.200000e+01 : f32
    %12 = vector.broadcast %cst_5 : f32 to vector<16x1xf32>
    %13 = arith.divf %11, %12 : vector<16x1xf32>
    %cst_6 = arith.constant 9.99999974E-6 : f32
    %14 = vector.broadcast %cst_6 : f32 to vector<16x1xf32>
    %15 = arith.addf %13, %14 : vector<16x1xf32>
    %16 = math.rsqrt %15 : vector<16x1xf32>
    %17 = vector.broadcast %16 : vector<16x1xf32> to vector<16x32xf32>
    %18 = arith.mulf %8, %17 : vector<16x32xf32>
    %c0_7 = arith.constant 0 : index
    %c0_8 = arith.constant 0 : index
    %19 = vector.load %arg3[%c0_7, %c0_8] : memref<1x32xf32, #tpu.memory_space<vmem>>, vector<1x32xf32>
    %20 = vector.broadcast %19 : vector<1x32xf32> to vector<16x32xf32>
    %21 = arith.mulf %18, %20 : vector<16x32xf32>
    %c0_9 = arith.constant 0 : index
    %c0_10 = arith.constant 0 : index
    %22 = vector.load %arg4[%c0_9, %c0_10] : memref<1x32xf32, #tpu.memory_space<vmem>>, vector<1x32xf32>
    %23 = vector.broadcast %22 : vector<1x32xf32> to vector<16x32xf32>
    %24 = arith.addf %21, %23 : vector<16x32xf32>
    %c0_11 = arith.constant 0 : index
    %c0_12 = arith.constant 0 : index
    %25 = vector.load %arg5[%c0_11, %c0_12] : memref<16x32xf32, #tpu.memory_space<vmem>>, vector<16x32xf32>
    tpu.vector_store %arg5[%c0_11, %c0_12], %24 {strides = array<i32>} : memref<16x32xf32, #tpu.memory_space<vmem>>, vector<16x32xf32>,
    %c0_13 = arith.constant 0 : index
    %c0_14 = arith.constant 0 : index
    %26 = vector.load %arg6[%c0_13, %c0_14] : memref<16x32xf32, #tpu.memory_space<vmem>>, vector<16x32xf32>
    tpu.vector_store %arg6[%c0_13, %c0_14], %2 {strides = array<i32>} : memref<16x32xf32, #tpu.memory_space<vmem>>, vector<16x32xf32>,
    return
  }
  func.func @transform_0(%arg0: i32) -> (i32, i32) {
    %c0_i32 = arith.constant 0 : i32
    %c0_i32_0 = arith.constant 0 : i32
    return %arg0, %c0_i32 : i32, i32
  }
  func.func @transform_1(%arg0: i32) -> (i32, i32) {
    %c0_i32 = arith.constant 0 : i32
    %c0_i32_0 = arith.constant 0 : i32
    return %arg0, %c0_i32 : i32, i32
  }
  func.func @transform_2(%arg0: i32) -> (i32, i32) {
    %c0_i32 = arith.constant 0 : i32
    %c0_i32_0 = arith.constant 0 : i32
    %c0_i32_1 = arith.constant 0 : i32
    return %c0_i32, %c0_i32_0 : i32, i32
  }
  func.func @transform_3(%arg0: i32) -> (i32, i32) {
    %c0_i32 = arith.constant 0 : i32
    %c0_i32_0 = arith.constant 0 : i32
    %c0_i32_1 = arith.constant 0 : i32
    return %c0_i32, %c0_i32_0 : i32, i32
  }
  func.func @transform_4(%arg0: i32) -> (i32, i32) {
    %c0_i32 = arith.constant 0 : i32
    %c0_i32_0 = arith.constant 0 : i32
    return %arg0, %c0_i32 : i32, i32
  }
  func.func @transform_5(%arg0: i32) -> (i32, i32) {
    %c0_i32 = arith.constant 0 : i32
    %c0_i32_0 = arith.constant 0 : i32
    return %arg0, %c0_i32 : i32, i32
  }
}

</mosaic_0001>

<llo_original>
// kernel: tpu_custom_call.1
$region0: #{tpu_custom_call.1}
  #allocation0 [shape = 'u32[]', space=smem, size = 0x4, offset = 0x4, fixed_abs, tag = 'smem constant byte address 0x4 - core index']
  #allocation1 [shape = 'u32[72,128]{1,0:T(1,128)}', space=vmem, size = 0x9000, scoped, tag = 'internal scratch']
  %s0 = inlined_call_operand.hbm [shape: f32[16,32], index: 0, kind: input, shape index: {}]
  %s1 = inlined_call_operand.hbm [shape: f32[16,32], index: 1, kind: input, shape index: {}]
  %s2 = inlined_call_operand.vmem [shape: f32[1,32], index: 2, kind: input, shape index: {}]
  %s3 = inlined_call_operand.vmem [shape: f32[1,32], index: 3, kind: input, shape index: {}]
  %s4 = inlined_call_operand.hbm [shape: f32[16,32], index: 4, kind: output, shape index: {0}]
  %s5 = inlined_call_operand.hbm [shape: f32[16,32], index: 5, kind: output, shape index: {1}]
  %6 = xla_tuple %s4, %s5
  %s7 = sld [smem:[#allocation0]]
  $region42: #{tpu_custom_call.1} parent=0
    _
  %s9 = ssub.s32 1, %s7
  %s10 = scalar_select 0, %s9, %s7
  $region1: #{tpu_custom_call.1} parent=0
    #allocation2 [shape = 'u8[8192]{0}', space=vmem, size = 0x2000, scoped, tag = 'input window, operand 0, single buffered']
    #allocation3 [shape = 's32[1]{0}', space=sflag, size = 0x4, scoped, tag = 'scoped memory for tpu_custom_call.1']
    #allocation4 [shape = 's32[1]{0}', space=sflag, size = 0x4, scoped, tag = 'scoped memory for tpu_custom_call.1']
    #allocation5 [shape = 'u8[8192]{0}', space=vmem, size = 0x2000, scoped, tag = 'input window, operand 1, single buffered']
    #allocation6 [shape = 's32[1]{0}', space=sflag, size = 0x4, scoped, tag = 'scoped memory for tpu_custom_call.1']
    #allocation7 [shape = 'u8[8192]{0}', space=vmem, size = 0x2000, scoped, tag = 'output window, operand 0, single buffered']
    #allocation8 [shape = 'u8[8192]{0}', space=vmem, size = 0x2000, scoped, tag = 'output window, operand 1, single buffered']
    #allocation9 [shape = 's32[1]{0}', space=sflag, size = 0x4, scoped, tag = 'scoped memory for tpu_custom_call.1']
    %11 = vsyncpa [#allocation3], 0
    %12 = vsyncpa [#allocation6], 0
    %13 = vsyncpa [#allocation4], 0
    %14 = vsyncpa [#allocation9], 0
    // Predicated region
    $region2: #{tpu_custom_call.1} parent=1 // pred_check
      _
    $region3: #{tpu_custom_call.1} parent=1 // pred_check_branch
      %16 = sbr.rel (0) target = $region5
    $region4: #{tpu_custom_call.1} parent=1 // pred_region
      %18 = vsyncadd [#allocation3], 0
      %s19 = sshll.u32 %s0, 4
      %s20 = int_to_ptr.hbm [resolvable:$true] %s19
      %s21 = sshll.u32 [#allocation2], 4
      %s22 = int_to_ptr.vmem [resolvable:$true] %s21
      %27 = dma.hbm_to_vmem [thread:$0]  %s20, 256, %s22, [#allocation3], 128, 128, 8
    $region5: #{tpu_custom_call.1} parent=1 // pred_fallthru
      _
    // Predicated region
    $region6: #{tpu_custom_call.1} parent=1 // pred_check
      _
    $region7: #{tpu_custom_call.1} parent=1 // pred_check_branch
      %29 = sbr.rel (0) target = $region9
    $region8: #{tpu_custom_call.1} parent=1 // pred_region
      %31 = vsyncadd [#allocation6], 0
      %s32 = sshll.u32 %s1, 4
      %s33 = int_to_ptr.hbm [resolvable:$true] %s32
      %s34 = sshll.u32 [#allocation5], 4
      %s35 = int_to_ptr.vmem [resolvable:$true] %s34
      %40 = dma.hbm_to_vmem [thread:$0]  %s33, 256, %s35, [#allocation6], 128, 128, 8
    $region9: #{tpu_custom_call.1} parent=1 // pred_fallthru
      _
    // Predicated region
    $region10: #{tpu_custom_call.1} parent=1 // pred_check
      _
    $region11: #{tpu_custom_call.1} parent=1 // pred_check_branch
      %42 = sbr.rel (0) target = $region13
    $region12: #{tpu_custom_call.1} parent=1 // pred_region
      _
    $region13: #{tpu_custom_call.1} parent=1 // pred_fallthru
      _
    // Predicated region
    $region14: #{tpu_custom_call.1} parent=1 // pred_check
      _
    $region15: #{tpu_custom_call.1} parent=1 // pred_check_branch
      %44 = sbr.rel (0) target = $region17
    $region16: #{tpu_custom_call.1} parent=1 // pred_region
      _
    $region17: #{tpu_custom_call.1} parent=1 // pred_fallthru
      _
    // Predicated region
    $region18: #{tpu_custom_call.1} parent=1 // pred_check
      _
    $region19: #{tpu_custom_call.1} parent=1 // pred_check_branch
      %46 = sbr.rel (0) target = $region21
    $region20: #{tpu_custom_call.1} parent=1 // pred_region
      %48 = dma.done [#allocation3], 256
    $region21: #{tpu_custom_call.1} parent=1 // pred_fallthru
      _
    // Predicated region
    $region22: #{tpu_custom_call.1} parent=1 // pred_check
      _
    $region23: #{tpu_custom_call.1} parent=1 // pred_check_branch
      %50 = sbr.rel (0) target = $region25
    $region24: #{tpu_custom_call.1} parent=1 // pred_region
      %52 = dma.done [#allocation6], 256
    $region25: #{tpu_custom_call.1} parent=1 // pred_fallthru
      _
    %v53 = vld [vmem:[#allocation2] sm:$0xff]
    %v54 = vld [vmem:[#allocation2 + $0x8] sm:$0xff]
    %v55 = vld [vmem:[#allocation5] sm:$0xff]
    %v56 = vld [vmem:[#allocation5 + $0x8] sm:$0xff]
    %v57 = vadd.f32 %v53, %v55
    %v58 = vadd.f32 %v54, %v56
    %vm59 = vcmask 261120
    %v60 = vsel %vm59, %v57, 0.0
    %61 = vadd.xlane.f32.xlu0 %v60
    %v62 = vpop.xlane.xlu0 %61
    %v63 = vsel %vm59, %v58, 0.0
    %64 = vadd.xlane.f32.xlu0 %v63
    %v65 = vpop.xlane.xlu0 %64
    %v66 = vrcp.pop 32.0
    %v67 = vmul.f32 32.0, %v66
    %v68 = vsub.f32 1.0, %v67
    %v69 = vmul.f32 %v66, %v68
    %v70 = vadd.f32 %v66, %v69
    %vm71 = vweird.f32 %v66
    %v72 = vsel %vm71, %v66, %v70
    %v73 = vmul.f32 %v62, %v72
    %v74 = vmul.f32 %v65, %v72
    %v75 = vsub.f32 %v57, %v73
    %v76 = vsub.f32 %v58, %v74
    %v77 = vmul.f32 %v75, %v75
    %v78 = vmul.f32 %v76, %v76
    %v79 = vsel %vm59, %v77, 0.0
    %80 = vadd.xlane.f32.xlu0 %v79
    %v81 = vpop.xlane.xlu0 %80
    %v82 = vsel %vm59, %v78, 0.0
    %83 = vadd.xlane.f32.xlu0 %v82
    %v84 = vpop.xlane.xlu0 %83
    %v85 = vmul.f32 %v81, %v72
    %v86 = vmul.f32 %v84, %v72
    %v87 = vadd.f32 %v85, 1e-05
    %v88 = vadd.f32 %v86, 1e-05
    %v89 = vrsqrt.pop %v87
    %v90 = vmul.f32 %v89, %v87
    %v91 = vmul.f32 %v90, %v89
    %v92 = vmul.f32 0.5, %v91
    %v93 = vsub.f32 1.5, %v92
    %v94 = vmul.f32 %v89, %v93
    %vm95 = vweird.f32 %v87
    %vm96 = vweird.f32 %v89
    %vm97 = vmor %vm95, %vm96
    %v98 = vsel %vm97, %v89, %v94
    %v99 = vrsqrt.pop %v88
    %v100 = vmul.f32 %v99, %v88
    %v101 = vmul.f32 %v100, %v99
    %v102 = vmul.f32 0.5, %v101
    %v103 = vsub.f32 1.5, %v102
    %v104 = vmul.f32 %v99, %v103
    %vm105 = vweird.f32 %v88
    %vm106 = vweird.f32 %v99
    %vm107 = vmor %vm105, %vm106
    %v108 = vsel %vm107, %v99, %v104
    %v109 = vmul.f32 %v75, %v98
    %v110 = vmul.f32 %v76, %v108
    %v111 = vld [vmem:[%s2] sm:$0x1]
    %v113 = vperm.slane %v111, 0
    %v115 = vmul.f32 %v109, %v113
    %v116 = vmul.f32 %v110, %v113
    %v117 = vld [vmem:[%s3] sm:$0x1]
    %v119 = vperm.slane %v117, 0
    %v121 = vadd.f32 %v115, %v119
    %v122 = vadd.f32 %v116, %v119
    %123 = vst.msk [vmem:[#allocation7] sm:$0xff] %vm59, %v121
    %124 = vst.msk [vmem:[#allocation7 + $0x8] sm:$0xff] %vm59, %v122
    %125 = vst.msk [vmem:[#allocation8] sm:$0xff] %vm59, %v57
    %126 = vst.msk [vmem:[#allocation8 + $0x8] sm:$0xff] %vm59, %v58
    // Predicated region
    $region26: #{tpu_custom_call.1} parent=1 // pred_check
      _
    $region27: #{tpu_custom_call.1} parent=1 // pred_check_branch
      %128 = sbr.rel (0) target = $region29
    $region28: #{tpu_custom_call.1} parent=1 // pred_region
      %130 = vsyncadd [#allocation4], 0
      %s131 = sshll.u32 [#allocation7], 4
      %s132 = int_to_ptr.vmem [resolvable:$true] %s131
      %s133 = sshll.u32 %s4, 4
      %s134 = int_to_ptr.hbm [resolvable:$true] %s133
      %139 = dma.vmem_to_hbm [thread:$0]  %s132, 256, %s134, [#allocation4], 128, 128, 8
    $region29: #{tpu_custom_call.1} parent=1 // pred_fallthru
      _
    // Predicated region
    $region30: #{tpu_custom_call.1} parent=1 // pred_check
      _
    $region31: #{tpu_custom_call.1} parent=1 // pred_check_branch
      %141 = sbr.rel (0) target = $region33
    $region32: #{tpu_custom_call.1} parent=1 // pred_region
      %143 = vsyncadd [#allocation9], 0
      %s144 = sshll.u32 [#allocation8], 4
      %s145 = int_to_ptr.vmem [resolvable:$true] %s144
      %s146 = sshll.u32 %s5, 4
      %s147 = int_to_ptr.hbm [resolvable:$true] %s146
      %152 = dma.vmem_to_hbm [thread:$0]  %s145, 256, %s147, [#allocation9], 128, 128, 8
    $region33: #{tpu_custom_call.1} parent=1 // pred_fallthru
      _
    // Predicated region
    $region34: #{tpu_custom_call.1} parent=1 // pred_check
      _
    $region35: #{tpu_custom_call.1} parent=1 // pred_check_branch
      %154 = sbr.rel (0) target = $region37
    $region36: #{tpu_custom_call.1} parent=1 // pred_region
      %156 = dma.done [#allocation4], 256
    $region37: #{tpu_custom_call.1} parent=1 // pred_fallthru
      _
    // Predicated region
    $region38: #{tpu_custom_call.1} parent=1 // pred_check
      _
    $region39: #{tpu_custom_call.1} parent=1 // pred_check_branch
      %158 = sbr.rel (0) target = $region41
    $region40: #{tpu_custom_call.1} parent=1 // pred_region
      %160 = dma.done [#allocation9], 256
    $region41: #{tpu_custom_call.1} parent=1 // pred_fallthru
      _
    %161 = vsyncpa [#allocation3], 1
    %162 = vsyncpa [#allocation6], 1
    %163 = vsyncpa [#allocation4], 1
    %164 = vsyncpa [#allocation9], 1

</llo_original>
